<compile_context>
chip_gen: v6e
topology: v6e:2x2x1
jax: 0.10.0
libtpu: 0.0.40
codegen_flags: <defaults>
</compile_context>

<pallas_src>
import functools

import jax
import jax.numpy as jnp
from jax.experimental import pallas as pl
from jax.experimental.pallas import tpu as pltpu


LN_EPS = 1e-5   # torch.nn.LayerNorm default
LANE = 128


def _round_up(n, m):
    return (n + m - 1) // m * m


def _cdiv(a, b):
    return -(-a // b)


def _layernorm_masked(x, gamma, beta, n_true):
    """LayerNorm over the last dim; only the first `n_true` lanes are real.

    Padded lanes of `x` are exactly 0 (zero-padded weights/biases), so sum(x)
    is already the true sum; the lane mask only matters for the centered term
    in the variance.  Math in f32; rsqrt goes to the EUP slot.
    """
    c_pad = x.shape[-1]
    inv_n = 1.0 / float(n_true)
    mean = jnp.sum(x, axis=-1, keepdims=True) * inv_n
    xc = x - mean
    if c_pad != n_true:
        lane = jax.lax.broadcasted_iota(jnp.int32, (1, c_pad), 1)
        xc = xc * (lane < n_true).astype(x.dtype)
    var = jnp.sum(xc * xc, axis=-1, keepdims=True) * inv_n
    inv = jax.lax.rsqrt(var + LN_EPS)
    return xc * inv * gamma + beta


def mlp_kernel(x_ref,          # (tm, cin_p)       bf16
               wxf_ref,        # (cin_p, hid_p+out_p) bf16  = [w1 | w_shortcut]
               w2_ref,         # (hid_p, out_p)    bf16
               vh_ref,         # (3, hid_p)  f32   = [b1; gamma1; beta1]
               vo_ref,         # (6, out_p)  f32   = [bs; gs; bes; b2; g2; be2]
               o_ref,          # (tm, out_p) f32
               *, hid_p, hidden_true, out_true):
    x = x_ref[...]
    vh = vh_ref[...]
    vo = vo_ref[...]

    # One wide bf16 MXU pass for both x-consuming matmuls, f32 accumulation,
    # split at a 128-lane boundary (no layout copies).
    hs = jnp.dot(x, wxf_ref[...], preferred_element_type=jnp.float32)
    h = hs[:, :hid_p] + vh[0:1, :]          # linear1 pre-activation
    s = hs[:, hid_p:] + vo[0:1, :]          # shortcut Linear output

    # linear1 -> LN(hidden) -> ReLU
    h = _layernorm_masked(h, vh[1:2, :], vh[2:3, :], hidden_true)
    h = jnp.maximum(h, 0.0)

    # linear2 (bf16 MXU pass) -> LN(out)
    o = jnp.dot(h.astype(w2_ref.dtype), w2_ref[...],
                preferred_element_type=jnp.float32) + vo[3:4, :]
    o = _layernorm_masked(o, vo[4:5, :], vo[5:6, :], out_true)

    # shortcut LN(out)
    s = _layernorm_masked(s, vo[1:2, :], vo[2:3, :], out_true)

    o_ref[...] = jnp.maximum(o + s, 0.0).astype(o_ref.dtype)


# ----------------------------------------------------------------- packing

def pack_mlp_params(params, compute_dtype=jnp.bfloat16):
    """One-time padding / fusion / casting of the MLP parameters.

    Zero-padding of weight columns, biases, gammas and betas is REQUIRED for
    the in-kernel masked LayerNorm to be exact.
    """
    cin, hidden = params["w1"].shape
    cout = params["w2"].shape[1]
    cin_p, hid_p, out_p = (_round_up(c, LANE) for c in (cin, hidden, cout))

    def pad_w(w, rows, cols):
        return jnp.pad(w, ((0, rows - w.shape[0]), (0, cols - w.shape[1])))

    def pad_v(v, cols):
        return jnp.pad(v, ((0, 0), (0, cols - v.shape[1])))

    # fuse [w1 | w_shortcut] along the output dim (both consume x); bf16 for MXU
    wxf = jnp.concatenate([pad_w(params["w1"], cin_p, hid_p),
                           pad_w(params["ws"], cin_p, out_p)],
                          axis=1).astype(compute_dtype)
    w2 = pad_w(params["w2"], hid_p, out_p).astype(compute_dtype)

    # stacked per-channel vectors (f32): LN math stays in f32
    vh = jnp.concatenate([pad_v(params["b1"], hid_p),
                          pad_v(params["g1"], hid_p),
                          pad_v(params["be1"], hid_p)], axis=0).astype(jnp.float32)
    vo = jnp.concatenate([pad_v(params["bs"], out_p),
                          pad_v(params["gs"], out_p),
                          pad_v(params["bes"], out_p),
                          pad_v(params["b2"], out_p),
                          pad_v(params["g2"], out_p),
                          pad_v(params["be2"], out_p)], axis=0).astype(jnp.float32)

    return dict(wxf=wxf, w2=w2, vh=vh, vo=vo,
                cin=cin, hidden=hidden, cout=cout,
                cin_p=cin_p, hid_p=hid_p, out_p=out_p,
                compute_dtype=compute_dtype)


def _pick_row_tile(M, tm_max, granule):
    """Balanced row tile: minimize row padding, keep tm a multiple of `granule`,
    and keep >= 2 grid steps once there is enough work to split across v7x's
    two TensorCores."""
    n_steps = max(1, _cdiv(M, tm_max))
    if M >= 256:
        n_steps = max(n_steps, 2)
    tm = _round_up(_cdiv(M, n_steps), granule)
    m_p = _round_up(M, tm)
    return tm, m_p, m_p // tm


# ----------------------------------------------------------------- forward

def mlp_forward(x, packed, *, tm_max=512):
    M, cin = x.shape
    assert cin == packed["cin"]
    cin_p, hid_p, out_p = packed["cin_p"], packed["hid_p"], packed["out_p"]
    hidden, cout = packed["hidden"], packed["cout"]
    compute_dtype = packed["compute_dtype"]
    nfused = hid_p + out_p
    out_dtype = x.dtype

    # bf16 packs two rows per sublane -> keep tm a multiple of 16
    granule = 16 if compute_dtype == jnp.bfloat16 else 8
    tm, m_p, grid = _pick_row_tile(M, tm_max, granule)

    xp = x
    if m_p != M or cin_p != cin:
        xp = jnp.pad(x, ((0, m_p - M), (0, cin_p - cin)))
    xp = xp.astype(compute_dtype)

    # VMEM budget: actual working set with headroom, capped at 48 MiB so v7x's
    # 64 MiB physical VMEM keeps room for Mosaic internals.
    w_itm = jnp.dtype(compute_dtype).itemsize
    w_bytes = (cin_p * nfused + hid_p * out_p) * w_itm
    vec_bytes = (8 * hid_p + 8 * out_p) * 4
    io_bytes = 2 * tm * cin_p * w_itm + 2 * tm * out_p * jnp.dtype(out_dtype).itemsize
    tmp_bytes = tm * (nfused + hid_p + 2 * out_p) * 4
    need = 2 * w_bytes + 2 * vec_bytes + io_bytes + tmp_bytes
    vmem_limit = int(min(48 * 1024 * 1024, max(32 * 1024 * 1024, 2 * need)))

    kernel = functools.partial(mlp_kernel, hid_p=hid_p,
                               hidden_true=hidden, out_true=cout)

    def call(weight_mode):
        def res_spec(shape):
            idx = lambda i: (0,) * len(shape)
            if weight_mode is None:
                return pl.BlockSpec(shape, idx)
            return pl.BlockSpec(shape, idx, pipeline_mode=weight_mode)

        in_specs = [
            pl.BlockSpec((tm, cin_p), lambda i: (i, 0)),   # x row tile (pipelined)
            res_spec((cin_p, nfused)),                      # fused [w1 | ws]
            res_spec((hid_p, out_p)),                       # w2
            res_spec((3, hid_p)),                           # b1 / gamma1 / beta1
            res_spec((6, out_p)),                           # bs/gs/bes/b2/g2/be2
        ]
        return pl.pallas_call(
            kernel,
            out_shape=jax.ShapeDtypeStruct((m_p, out_p), out_dtype),
            grid_spec=pltpu.PrefetchScalarGridSpec(
                num_scalar_prefetch=0,
                grid=(grid,),
                in_specs=in_specs,
                out_specs=pl.BlockSpec((tm, out_p), lambda i: (i, 0)),
            ),
            compiler_params=pltpu.CompilerParams(
                dimension_semantics=("parallel",),
                vmem_limit_bytes=vmem_limit),
        )(xp, packed["wxf"], packed["w2"], packed["vh"], packed["vo"])

    try:
        # single-buffer the constant-index weight operands (fetched once anyway)
        out = call(pl.Buffered(1))
    except Exception:
        # fallback for JAX versions without pipeline_mode support on TPU
        out = call(None)

    return out[:M, :cout]


# ---------------------------------------------------------------- params / ref

def xavier_uniform(key, fan_in, fan_out, dtype=jnp.float32):
    limit = (6.0 / (fan_in + fan_out)) ** 0.5
    return jax.random.uniform(key, (fan_in, fan_out), dtype, -limit, limit)


def make_params(key, in_channel, hidden, out_channel):
    k1, k2, k3 = jax.random.split(key, 3)
    return {
        "w1": xavier_uniform(k1, in_channel, hidden),
        "b1": jnp.full((1, hidden), 0.01, jnp.float32),
        "g1": jnp.ones((1, hidden), jnp.float32),
        "be1": jnp.zeros((1, hidden), jnp.float32),
        "w2": xavier_uniform(k2, hidden, out_channel),
        "b2": jnp.full((1, out_channel), 0.01, jnp.float32),
        "g2": jnp.ones((1, out_channel), jnp.float32),
        "be2": jnp.zeros((1, out_channel), jnp.float32),
        # shortcut: Linear(in, out) + LayerNorm(out)  (in_channel != out_channel)
        "ws": xavier_uniform(k3, in_channel, out_channel),
        "bs": jnp.zeros((1, out_channel), jnp.float32),
        "gs": jnp.ones((1, out_channel), jnp.float32),
        "bes": jnp.zeros((1, out_channel), jnp.float32),
    }


def mlp_reference(x, p):
    def ln(v, g, b):
        m = jnp.mean(v, -1, keepdims=True)
        var = jnp.mean((v - m) ** 2, -1, keepdims=True)
        return (v - m) / jnp.sqrt(var + LN_EPS) * g + b

    h = jnp.maximum(ln(x @ p["w1"] + p["b1"], p["g1"], p["be1"]), 0.0)
    o = ln(h @ p["w2"] + p["b2"], p["g2"], p["be2"])
    s = ln(x @ p["ws"] + p["bs"], p["gs"], p["bes"])
    return jnp.maximum(o + s, 0.0)


if __name__ == "__main__":
    key = jax.random.PRNGKey(0)
    kx, kp = jax.random.split(key)

    M, in_channel, hidden, out_channel = 16, 16, 64, 32
    x = jax.random.normal(kx, (M, in_channel), jnp.float32)
    params = make_params(kp, in_channel, hidden, out_channel)

    packed = pack_mlp_params(params)          # one-time param packing
    out = jax.block_until_ready(mlp_forward(x, packed))

    ref = mlp_reference(x, params)
    assert out.shape == (M, out_channel)
    # bf16 MXU passes with f32 accumulation -> relaxed tolerance vs f32 reference
    max_err = float(jnp.max(jnp.abs(out - ref)))
    assert jnp.allclose(out, ref, atol=3e-2, rtol=3e-2), max_err

    print("KERNEL_OK")
</pallas_src>

<mosaic_0001>
module attributes {stable_mosaic.version = 11 : i64} {
  func.func @mlp_kernel(%arg0: i32, %arg1: memref<16x128xbf16, #tpu.memory_space<vmem>>, %arg2: memref<128x256xbf16, #tpu.memory_space<vmem>>, %arg3: memref<128x128xbf16, #tpu.memory_space<vmem>>, %arg4: memref<3x128xf32, #tpu.memory_space<vmem>>, %arg5: memref<6x128xf32, #tpu.memory_space<vmem>>, %arg6: memref<16x128xf32, #tpu.memory_space<vmem>>) attributes {dimension_semantics = [#tpu.dimension_semantics<parallel>], iteration_bounds = array<i64: 1>, scalar_prefetch = 0 : i64, scratch_operands = 0 : i64, tpu.core_type = #tpu.core_type<tc>, window_params = [{transform_indices = @transform_0, window_bounds = array<i64: 16, 128>}, {pipeline_mode = #tpu.pipeline_mode<synchronous>, transform_indices = @transform_1, window_bounds = array<i64: 128, 256>}, {pipeline_mode = #tpu.pipeline_mode<synchronous>, transform_indices = @transform_2, window_bounds = array<i64: 128, 128>}, {pipeline_mode = #tpu.pipeline_mode<synchronous>, transform_indices = @transform_3, window_bounds = array<i64: 3, 128>}, {pipeline_mode = #tpu.pipeline_mode<synchronous>, transform_indices = @transform_4, window_bounds = array<i64: 6, 128>}, {transform_indices = @transform_5, window_bounds = array<i64: 16, 128>}]} {
    %c0 = arith.constant 0 : index
    %c0_0 = arith.constant 0 : index
    %0 = vector.load %arg1[%c0, %c0_0] : memref<16x128xbf16, #tpu.memory_space<vmem>>, vector<16x128xbf16>
    %c0_1 = arith.constant 0 : index
    %c0_2 = arith.constant 0 : index
    %1 = vector.load %arg4[%c0_1, %c0_2] : memref<3x128xf32, #tpu.memory_space<vmem>>, vector<3x128xf32>
    %c0_3 = arith.constant 0 : index
    %c0_4 = arith.constant 0 : index
    %2 = vector.load %arg5[%c0_3, %c0_4] : memref<6x128xf32, #tpu.memory_space<vmem>>, vector<6x128xf32>
    %c0_5 = arith.constant 0 : index
    %c0_6 = arith.constant 0 : index
    %3 = vector.load %arg2[%c0_5, %c0_6] : memref<128x256xbf16, #tpu.memory_space<vmem>>, vector<128x256xbf16>
    %cst = arith.constant dense<0.000000e+00> : vector<16x256xf32>
    %4 = tpu.matmul %0, %3, %cst {dimension_numbers = #tpu.dot_dimension_numbers<[1], [0], [0], [1], [0, 0, 1, 1], [], []>} : vector<16x128xbf16>, vector<128x256xbf16>, vector<16x256xf32> -> vector<16x256xf32>
    %5 = vector.extract_strided_slice %4 {offsets = [0, 0], sizes = [16, 128], strides = [1, 1]} : vector<16x256xf32> to vector<16x128xf32>
    %6 = vector.extract_strided_slice %1 {offsets = [0, 0], sizes = [1, 128], strides = [1, 1]} : vector<3x128xf32> to vector<1x128xf32>
    %7 = vector.broadcast %6 : vector<1x128xf32> to vector<16x128xf32>
    %8 = arith.addf %5, %7 : vector<16x128xf32>
    %9 = vector.extract_strided_slice %4 {offsets = [0, 128], sizes = [16, 128], strides = [1, 1]} : vector<16x256xf32> to vector<16x128xf32>
    %10 = vector.extract_strided_slice %2 {offsets = [0, 0], sizes = [1, 128], strides = [1, 1]} : vector<6x128xf32> to vector<1x128xf32>
    %11 = vector.broadcast %10 : vector<1x128xf32> to vector<16x128xf32>
    %12 = arith.addf %9, %11 : vector<16x128xf32>
    %13 = vector.extract_strided_slice %1 {offsets = [1, 0], sizes = [1, 128], strides = [1, 1]} : vector<3x128xf32> to vector<1x128xf32>
    %14 = vector.extract_strided_slice %1 {offsets = [2, 0], sizes = [1, 128], strides = [1, 1]} : vector<3x128xf32> to vector<1x128xf32>
    %cst_7 = arith.constant dense<0.000000e+00> : vector<16xf32>
    %15 = vector.multi_reduction <add>, %8, %cst_7 [1] : vector<16x128xf32> to vector<16xf32>
    %16 = vector.shape_cast %15 : vector<16xf32> to vector<16x1xf32>
    %cst_8 = arith.constant 1.562500e-02 : f32
    %17 = vector.broadcast %cst_8 : f32 to vector<16x1xf32>
    %18 = arith.mulf %16, %17 : vector<16x1xf32>
    %19 = vector.broadcast %18 : vector<16x1xf32> to vector<16x128xf32>
    %20 = arith.subf %8, %19 : vector<16x128xf32>
    %21 = tpu.iota {dimensions = array<i32: 1>} : vector<1x128xi32>
    %c64_i32 = arith.constant 64 : i32
    %22 = vector.broadcast %c64_i32 : i32 to vector<1x128xi32>
    %23 = arith.cmpi slt, %21, %22 : vector<1x128xi32>
    %24 = arith.extui %23 : vector<1x128xi1> to vector<1x128xi32>
    %25 = arith.sitofp %24 : vector<1x128xi32> to vector<1x128xf32>
    %26 = vector.broadcast %25 : vector<1x128xf32> to vector<16x128xf32>
    %27 = arith.mulf %20, %26 : vector<16x128xf32>
    %28 = arith.mulf %27, %27 : vector<16x128xf32>
    %cst_9 = arith.constant dense<0.000000e+00> : vector<16xf32>
    %29 = vector.multi_reduction <add>, %28, %cst_9 [1] : vector<16x128xf32> to vector<16xf32>
    %30 = vector.shape_cast %29 : vector<16xf32> to vector<16x1xf32>
    %cst_10 = arith.constant 1.562500e-02 : f32
    %31 = vector.broadcast %cst_10 : f32 to vector<16x1xf32>
    %32 = arith.mulf %30, %31 : vector<16x1xf32>
    %cst_11 = arith.constant 9.99999974E-6 : f32
    %33 = vector.broadcast %cst_11 : f32 to vector<16x1xf32>
    %34 = arith.addf %32, %33 : vector<16x1xf32>
    %35 = math.rsqrt %34 : vector<16x1xf32>
    %36 = vector.broadcast %35 : vector<16x1xf32> to vector<16x128xf32>
    %37 = arith.mulf %27, %36 : vector<16x128xf32>
    %38 = vector.broadcast %13 : vector<1x128xf32> to vector<16x128xf32>
    %39 = arith.mulf %37, %38 : vector<16x128xf32>
    %40 = vector.broadcast %14 : vector<1x128xf32> to vector<16x128xf32>
    %41 = arith.addf %39, %40 : vector<16x128xf32>
    %cst_12 = arith.constant 0.000000e+00 : f32
    %42 = vector.broadcast %cst_12 : f32 to vector<16x128xf32>
    %43 = arith.maximumf %41, %42 : vector<16x128xf32>
    %44 = arith.truncf %43 : vector<16x128xf32> to vector<16x128xbf16>
    %c0_13 = arith.constant 0 : index
    %c0_14 = arith.constant 0 : index
    %45 = vector.load %arg3[%c0_13, %c0_14] : memref<128x128xbf16, #tpu.memory_space<vmem>>, vector<128x128xbf16>
    %cst_15 = arith.constant dense<0.000000e+00> : vector<16x128xf32>
    %46 = tpu.matmul %44, %45, %cst_15 {dimension_numbers = #tpu.dot_dimension_numbers<[1], [0], [0], [1], [0, 0, 1, 1], [], []>} : vector<16x128xbf16>, vector<128x128xbf16>, vector<16x128xf32> -> vector<16x128xf32>
    %47 = vector.extract_strided_slice %2 {offsets = [3, 0], sizes = [1, 128], strides = [1, 1]} : vector<6x128xf32> to vector<1x128xf32>
    %48 = vector.broadcast %47 : vector<1x128xf32> to vector<16x128xf32>
    %49 = arith.addf %46, %48 : vector<16x128xf32>
    %50 = vector.extract_strided_slice %2 {offsets = [4, 0], sizes = [1, 128], strides = [1, 1]} : vector<6x128xf32> to vector<1x128xf32>
    %51 = vector.extract_strided_slice %2 {offsets = [5, 0], sizes = [1, 128], strides = [1, 1]} : vector<6x128xf32> to vector<1x128xf32>
    %cst_16 = arith.constant dense<0.000000e+00> : vector<16xf32>
    %52 = vector.multi_reduction <add>, %49, %cst_16 [1] : vector<16x128xf32> to vector<16xf32>
    %53 = vector.shape_cast %52 : vector<16xf32> to vector<16x1xf32>
    %cst_17 = arith.constant 3.125000e-02 : f32
    %54 = vector.broadcast %cst_17 : f32 to vector<16x1xf32>
    %55 = arith.mulf %53, %54 : vector<16x1xf32>
    %56 = vector.broadcast %55 : vector<16x1xf32> to vector<16x128xf32>
    %57 = arith.subf %49, %56 : vector<16x128xf32>
    %58 = tpu.iota {dimensions = array<i32: 1>} : vector<1x128xi32>
    %c32_i32 = arith.constant 32 : i32
    %59 = vector.broadcast %c32_i32 : i32 to vector<1x128xi32>
    %60 = arith.cmpi slt, %58, %59 : vector<1x128xi32>
    %61 = arith.extui %60 : vector<1x128xi1> to vector<1x128xi32>
    %62 = arith.sitofp %61 : vector<1x128xi32> to vector<1x128xf32>
    %63 = vector.broadcast %62 : vector<1x128xf32> to vector<16x128xf32>
    %64 = arith.mulf %57, %63 : vector<16x128xf32>
    %65 = arith.mulf %64, %64 : vector<16x128xf32>
    %cst_18 = arith.constant dense<0.000000e+00> : vector<16xf32>
    %66 = vector.multi_reduction <add>, %65, %cst_18 [1] : vector<16x128xf32> to vector<16xf32>
    %67 = vector.shape_cast %66 : vector<16xf32> to vector<16x1xf32>
    %cst_19 = arith.constant 3.125000e-02 : f32
    %68 = vector.broadcast %cst_19 : f32 to vector<16x1xf32>
    %69 = arith.mulf %67, %68 : vector<16x1xf32>
    %cst_20 = arith.constant 9.99999974E-6 : f32
    %70 = vector.broadcast %cst_20 : f32 to vector<16x1xf32>
    %71 = arith.addf %69, %70 : vector<16x1xf32>
    %72 = math.rsqrt %71 : vector<16x1xf32>
    %73 = vector.broadcast %72 : vector<16x1xf32> to vector<16x128xf32>
    %74 = arith.mulf %64, %73 : vector<16x128xf32>
    %75 = vector.broadcast %50 : vector<1x128xf32> to vector<16x128xf32>
    %76 = arith.mulf %74, %75 : vector<16x128xf32>
    %77 = vector.broadcast %51 : vector<1x128xf32> to vector<16x128xf32>
    %78 = arith.addf %76, %77 : vector<16x128xf32>
    %79 = vector.extract_strided_slice %2 {offsets = [1, 0], sizes = [1, 128], strides = [1, 1]} : vector<6x128xf32> to vector<1x128xf32>
    %80 = vector.extract_strided_slice %2 {offsets = [2, 0], sizes = [1, 128], strides = [1, 1]} : vector<6x128xf32> to vector<1x128xf32>
    %cst_21 = arith.constant dense<0.000000e+00> : vector<16xf32>
    %81 = vector.multi_reduction <add>, %12, %cst_21 [1] : vector<16x128xf32> to vector<16xf32>
    %82 = vector.shape_cast %81 : vector<16xf32> to vector<16x1xf32>
    %cst_22 = arith.constant 3.125000e-02 : f32
    %83 = vector.broadcast %cst_22 : f32 to vector<16x1xf32>
    %84 = arith.mulf %82, %83 : vector<16x1xf32>
    %85 = vector.broadcast %84 : vector<16x1xf32> to vector<16x128xf32>
    %86 = arith.subf %12, %85 : vector<16x128xf32>
    %87 = tpu.iota {dimensions = array<i32: 1>} : vector<1x128xi32>
    %c32_i32_23 = arith.constant 32 : i32
    %88 = vector.broadcast %c32_i32_23 : i32 to vector<1x128xi32>
    %89 = arith.cmpi slt, %87, %88 : vector<1x128xi32>
    %90 = arith.extui %89 : vector<1x128xi1> to vector<1x128xi32>
    %91 = arith.sitofp %90 : vector<1x128xi32> to vector<1x128xf32>
    %92 = vector.broadcast %91 : vector<1x128xf32> to vector<16x128xf32>
    %93 = arith.mulf %86, %92 : vector<16x128xf32>
    %94 = arith.mulf %93, %93 : vector<16x128xf32>
    %cst_24 = arith.constant dense<0.000000e+00> : vector<16xf32>
    %95 = vector.multi_reduction <add>, %94, %cst_24 [1] : vector<16x128xf32> to vector<16xf32>
    %96 = vector.shape_cast %95 : vector<16xf32> to vector<16x1xf32>
    %cst_25 = arith.constant 3.125000e-02 : f32
    %97 = vector.broadcast %cst_25 : f32 to vector<16x1xf32>
    %98 = arith.mulf %96, %97 : vector<16x1xf32>
    %cst_26 = arith.constant 9.99999974E-6 : f32
    %99 = vector.broadcast %cst_26 : f32 to vector<16x1xf32>
    %100 = arith.addf %98, %99 : vector<16x1xf32>
    %101 = math.rsqrt %100 : vector<16x1xf32>
    %102 = vector.broadcast %101 : vector<16x1xf32> to vector<16x128xf32>
    %103 = arith.mulf %93, %102 : vector<16x128xf32>
    %104 = vector.broadcast %79 : vector<1x128xf32> to vector<16x128xf32>
    %105 = arith.mulf %103, %104 : vector<16x128xf32>
    %106 = vector.broadcast %80 : vector<1x128xf32> to vector<16x128xf32>
    %107 = arith.addf %105, %106 : vector<16x128xf32>
    %108 = arith.addf %78, %107 : vector<16x128xf32>
    %cst_27 = arith.constant 0.000000e+00 : f32
    %109 = vector.broadcast %cst_27 : f32 to vector<16x128xf32>
    %110 = arith.maximumf %108, %109 : vector<16x128xf32>
    %c0_28 = arith.constant 0 : index
    %c0_29 = arith.constant 0 : index
    %111 = vector.load %arg6[%c0_28, %c0_29] : memref<16x128xf32, #tpu.memory_space<vmem>>, vector<16x128xf32>
    tpu.vector_store %arg6[%c0_28, %c0_29], %110 {strides = array<i32>} : memref<16x128xf32, #tpu.memory_space<vmem>>, vector<16x128xf32>,
    return
  }
  func.func @transform_0(%arg0: i32) -> (i32, i32) {
    %c0_i32 = arith.constant 0 : i32
    %c0_i32_0 = arith.constant 0 : i32
    return %arg0, %c0_i32 : i32, i32
  }
  func.func @transform_1(%arg0: i32) -> (i32, i32) {
    %c0_i32 = arith.constant 0 : i32
    %c0_i32_0 = arith.constant 0 : i32
    %c0_i32_1 = arith.constant 0 : i32
    return %c0_i32, %c0_i32_0 : i32, i32
  }
  func.func @transform_2(%arg0: i32) -> (i32, i32) {
    %c0_i32 = arith.constant 0 : i32
    %c0_i32_0 = arith.constant 0 : i32
    %c0_i32_1 = arith.constant 0 : i32
    return %c0_i32, %c0_i32_0 : i32, i32
  }
  func.func @transform_3(%arg0: i32) -> (i32, i32) {
    %c0_i32 = arith.constant 0 : i32
    %c0_i32_0 = arith.constant 0 : i32
    %c0_i32_1 = arith.constant 0 : i32
    return %c0_i32, %c0_i32_0 : i32, i32
  }
  func.func @transform_4(%arg0: i32) -> (i32, i32) {
    %c0_i32 = arith.constant 0 : i32
    %c0_i32_0 = arith.constant 0 : i32
    %c0_i32_1 = arith.constant 0 : i32
    return %c0_i32, %c0_i32_0 : i32, i32
  }
  func.func @transform_5(%arg0: i32) -> (i32, i32) {
    %c0_i32 = arith.constant 0 : i32
    %c0_i32_0 = arith.constant 0 : i32
    return %arg0, %c0_i32 : i32, i32
  }
}

module attributes {stable_mosaic.version = 11 : i64} {
  func.func @mlp_kernel(%arg0: i32, %arg1: memref<16x128xbf16, #tpu.memory_space<vmem>>, %arg2: memref<128x256xbf16, #tpu.memory_space<vmem>>, %arg3: memref<128x128xbf16, #tpu.memory_space<vmem>>, %arg4: memref<3x128xf32, #tpu.memory_space<vmem>>, %arg5: memref<6x128xf32, #tpu.memory_space<vmem>>, %arg6: memref<16x128xf32, #tpu.memory_space<vmem>>) attributes {dimension_semantics = [#tpu.dimension_semantics<parallel>], iteration_bounds = array<i64: 1>, scalar_prefetch = 0 : i64, scratch_operands = 0 : i64, tpu.core_type = #tpu.core_type<tc>, window_params = [{transform_indices = @transform_0, window_bounds = array<i64: 16, 128>}, {pipeline_mode = #tpu.pipeline_mode<synchronous>, transform_indices = @transform_1, window_bounds = array<i64: 128, 256>}, {pipeline_mode = #tpu.pipeline_mode<synchronous>, transform_indices = @transform_2, window_bounds = array<i64: 128, 128>}, {pipeline_mode = #tpu.pipeline_mode<synchronous>, transform_indices = @transform_3, window_bounds = array<i64: 3, 128>}, {pipeline_mode = #tpu.pipeline_mode<synchronous>, transform_indices = @transform_4, window_bounds = array<i64: 6, 128>}, {transform_indices = @transform_5, window_bounds = array<i64: 16, 128>}]} {
    %c0 = arith.constant 0 : index
    %c0_0 = arith.constant 0 : index
    %0 = vector.load %arg1[%c0, %c0_0] : memref<16x128xbf16, #tpu.memory_space<vmem>>, vector<16x128xbf16>
    %c0_1 = arith.constant 0 : index
    %c0_2 = arith.constant 0 : index
    %1 = vector.load %arg4[%c0_1, %c0_2] : memref<3x128xf32, #tpu.memory_space<vmem>>, vector<3x128xf32>
    %c0_3 = arith.constant 0 : index
    %c0_4 = arith.constant 0 : index
    %2 = vector.load %arg5[%c0_3, %c0_4] : memref<6x128xf32, #tpu.memory_space<vmem>>, vector<6x128xf32>
    %c0_5 = arith.constant 0 : index
    %c0_6 = arith.constant 0 : index
    %3 = vector.load %arg2[%c0_5, %c0_6] : memref<128x256xbf16, #tpu.memory_space<vmem>>, vector<128x256xbf16>
    %cst = arith.constant dense<0.000000e+00> : vector<16x256xf32>
    %4 = tpu.matmul %0, %3, %cst {dimension_numbers = #tpu.dot_dimension_numbers<[1], [0], [0], [1], [0, 0, 1, 1], [], []>} : vector<16x128xbf16>, vector<128x256xbf16>, vector<16x256xf32> -> vector<16x256xf32>
    %5 = vector.extract_strided_slice %4 {offsets = [0, 0], sizes = [16, 128], strides = [1, 1]} : vector<16x256xf32> to vector<16x128xf32>
    %6 = vector.extract_strided_slice %1 {offsets = [0, 0], sizes = [1, 128], strides = [1, 1]} : vector<3x128xf32> to vector<1x128xf32>
    %7 = vector.broadcast %6 : vector<1x128xf32> to vector<16x128xf32>
    %8 = arith.addf %5, %7 : vector<16x128xf32>
    %9 = vector.extract_strided_slice %4 {offsets = [0, 128], sizes = [16, 128], strides = [1, 1]} : vector<16x256xf32> to vector<16x128xf32>
    %10 = vector.extract_strided_slice %2 {offsets = [0, 0], sizes = [1, 128], strides = [1, 1]} : vector<6x128xf32> to vector<1x128xf32>
    %11 = vector.broadcast %10 : vector<1x128xf32> to vector<16x128xf32>
    %12 = arith.addf %9, %11 : vector<16x128xf32>
    %13 = vector.extract_strided_slice %1 {offsets = [1, 0], sizes = [1, 128], strides = [1, 1]} : vector<3x128xf32> to vector<1x128xf32>
    %14 = vector.extract_strided_slice %1 {offsets = [2, 0], sizes = [1, 128], strides = [1, 1]} : vector<3x128xf32> to vector<1x128xf32>
    %cst_7 = arith.constant dense<0.000000e+00> : vector<16xf32>
    %15 = vector.multi_reduction <add>, %8, %cst_7 [1] : vector<16x128xf32> to vector<16xf32>
    %16 = vector.shape_cast %15 : vector<16xf32> to vector<16x1xf32>
    %cst_8 = arith.constant 1.562500e-02 : f32
    %17 = vector.broadcast %cst_8 : f32 to vector<16x1xf32>
    %18 = arith.mulf %16, %17 : vector<16x1xf32>
    %19 = vector.broadcast %18 : vector<16x1xf32> to vector<16x128xf32>
    %20 = arith.subf %8, %19 : vector<16x128xf32>
    %21 = tpu.iota {dimensions = array<i32: 1>} : vector<1x128xi32>
    %c64_i32 = arith.constant 64 : i32
    %22 = vector.broadcast %c64_i32 : i32 to vector<1x128xi32>
    %23 = arith.cmpi slt, %21, %22 : vector<1x128xi32>
    %24 = arith.extui %23 : vector<1x128xi1> to vector<1x128xi32>
    %25 = arith.sitofp %24 : vector<1x128xi32> to vector<1x128xf32>
    %26 = vector.broadcast %25 : vector<1x128xf32> to vector<16x128xf32>
    %27 = arith.mulf %20, %26 : vector<16x128xf32>
    %28 = arith.mulf %27, %27 : vector<16x128xf32>
    %cst_9 = arith.constant dense<0.000000e+00> : vector<16xf32>
    %29 = vector.multi_reduction <add>, %28, %cst_9 [1] : vector<16x128xf32> to vector<16xf32>
    %30 = vector.shape_cast %29 : vector<16xf32> to vector<16x1xf32>
    %cst_10 = arith.constant 1.562500e-02 : f32
    %31 = vector.broadcast %cst_10 : f32 to vector<16x1xf32>
    %32 = arith.mulf %30, %31 : vector<16x1xf32>
    %cst_11 = arith.constant 9.99999974E-6 : f32
    %33 = vector.broadcast %cst_11 : f32 to vector<16x1xf32>
    %34 = arith.addf %32, %33 : vector<16x1xf32>
    %35 = math.rsqrt %34 : vector<16x1xf32>
    %36 = vector.broadcast %35 : vector<16x1xf32> to vector<16x128xf32>
    %37 = arith.mulf %27, %36 : vector<16x128xf32>
    %38 = vector.broadcast %13 : vector<1x128xf32> to vector<16x128xf32>
    %39 = arith.mulf %37, %38 : vector<16x128xf32>
    %40 = vector.broadcast %14 : vector<1x128xf32> to vector<16x128xf32>
    %41 = arith.addf %39, %40 : vector<16x128xf32>
    %cst_12 = arith.constant 0.000000e+00 : f32
    %42 = vector.broadcast %cst_12 : f32 to vector<16x128xf32>
    %43 = arith.maximumf %41, %42 : vector<16x128xf32>
    %44 = arith.truncf %43 : vector<16x128xf32> to vector<16x128xbf16>
    %c0_13 = arith.constant 0 : index
    %c0_14 = arith.constant 0 : index
    %45 = vector.load %arg3[%c0_13, %c0_14] : memref<128x128xbf16, #tpu.memory_space<vmem>>, vector<128x128xbf16>
    %cst_15 = arith.constant dense<0.000000e+00> : vector<16x128xf32>
    %46 = tpu.matmul %44, %45, %cst_15 {dimension_numbers = #tpu.dot_dimension_numbers<[1], [0], [0], [1], [0, 0, 1, 1], [], []>} : vector<16x128xbf16>, vector<128x128xbf16>, vector<16x128xf32> -> vector<16x128xf32>
    %47 = vector.extract_strided_slice %2 {offsets = [3, 0], sizes = [1, 128], strides = [1, 1]} : vector<6x128xf32> to vector<1x128xf32>
    %48 = vector.broadcast %47 : vector<1x128xf32> to vector<16x128xf32>
    %49 = arith.addf %46, %48 : vector<16x128xf32>
    %50 = vector.extract_strided_slice %2 {offsets = [4, 0], sizes = [1, 128], strides = [1, 1]} : vector<6x128xf32> to vector<1x128xf32>
    %51 = vector.extract_strided_slice %2 {offsets = [5, 0], sizes = [1, 128], strides = [1, 1]} : vector<6x128xf32> to vector<1x128xf32>
    %cst_16 = arith.constant dense<0.000000e+00> : vector<16xf32>
    %52 = vector.multi_reduction <add>, %49, %cst_16 [1] : vector<16x128xf32> to vector<16xf32>
    %53 = vector.shape_cast %52 : vector<16xf32> to vector<16x1xf32>
    %cst_17 = arith.constant 3.125000e-02 : f32
    %54 = vector.broadcast %cst_17 : f32 to vector<16x1xf32>
    %55 = arith.mulf %53, %54 : vector<16x1xf32>
    %56 = vector.broadcast %55 : vector<16x1xf32> to vector<16x128xf32>
    %57 = arith.subf %49, %56 : vector<16x128xf32>
    %58 = tpu.iota {dimensions = array<i32: 1>} : vector<1x128xi32>
    %c32_i32 = arith.constant 32 : i32
    %59 = vector.broadcast %c32_i32 : i32 to vector<1x128xi32>
    %60 = arith.cmpi slt, %58, %59 : vector<1x128xi32>
    %61 = arith.extui %60 : vector<1x128xi1> to vector<1x128xi32>
    %62 = arith.sitofp %61 : vector<1x128xi32> to vector<1x128xf32>
    %63 = vector.broadcast %62 : vector<1x128xf32> to vector<16x128xf32>
    %64 = arith.mulf %57, %63 : vector<16x128xf32>
    %65 = arith.mulf %64, %64 : vector<16x128xf32>
    %cst_18 = arith.constant dense<0.000000e+00> : vector<16xf32>
    %66 = vector.multi_reduction <add>, %65, %cst_18 [1] : vector<16x128xf32> to vector<16xf32>
    %67 = vector.shape_cast %66 : vector<16xf32> to vector<16x1xf32>
    %cst_19 = arith.constant 3.125000e-02 : f32
    %68 = vector.broadcast %cst_19 : f32 to vector<16x1xf32>
    %69 = arith.mulf %67, %68 : vector<16x1xf32>
    %cst_20 = arith.constant 9.99999974E-6 : f32
    %70 = vector.broadcast %cst_20 : f32 to vector<16x1xf32>
    %71 = arith.addf %69, %70 : vector<16x1xf32>
    %72 = math.rsqrt %71 : vector<16x1xf32>
    %73 = vector.broadcast %72 : vector<16x1xf32> to vector<16x128xf32>
    %74 = arith.mulf %64, %73 : vector<16x128xf32>
    %75 = vector.broadcast %50 : vector<1x128xf32> to vector<16x128xf32>
    %76 = arith.mulf %74, %75 : vector<16x128xf32>
    %77 = vector.broadcast %51 : vector<1x128xf32> to vector<16x128xf32>
    %78 = arith.addf %76, %77 : vector<16x128xf32>
    %79 = vector.extract_strided_slice %2 {offsets = [1, 0], sizes = [1, 128], strides = [1, 1]} : vector<6x128xf32> to vector<1x128xf32>
    %80 = vector.extract_strided_slice %2 {offsets = [2, 0], sizes = [1, 128], strides = [1, 1]} : vector<6x128xf32> to vector<1x128xf32>
    %cst_21 = arith.constant dense<0.000000e+00> : vector<16xf32>
    %81 = vector.multi_reduction <add>, %12, %cst_21 [1] : vector<16x128xf32> to vector<16xf32>
    %82 = vector.shape_cast %81 : vector<16xf32> to vector<16x1xf32>
    %cst_22 = arith.constant 3.125000e-02 : f32
    %83 = vector.broadcast %cst_22 : f32 to vector<16x1xf32>
    %84 = arith.mulf %82, %83 : vector<16x1xf32>
    %85 = vector.broadcast %84 : vector<16x1xf32> to vector<16x128xf32>
    %86 = arith.subf %12, %85 : vector<16x128xf32>
    %87 = tpu.iota {dimensions = array<i32: 1>} : vector<1x128xi32>
    %c32_i32_23 = arith.constant 32 : i32
    %88 = vector.broadcast %c32_i32_23 : i32 to vector<1x128xi32>
    %89 = arith.cmpi slt, %87, %88 : vector<1x128xi32>
    %90 = arith.extui %89 : vector<1x128xi1> to vector<1x128xi32>
    %91 = arith.sitofp %90 : vector<1x128xi32> to vector<1x128xf32>
    %92 = vector.broadcast %91 : vector<1x128xf32> to vector<16x128xf32>
    %93 = arith.mulf %86, %92 : vector<16x128xf32>
    %94 = arith.mulf %93, %93 : vector<16x128xf32>
    %cst_24 = arith.constant dense<0.000000e+00> : vector<16xf32>
    %95 = vector.multi_reduction <add>, %94, %cst_24 [1] : vector<16x128xf32> to vector<16xf32>
    %96 = vector.shape_cast %95 : vector<16xf32> to vector<16x1xf32>
    %cst_25 = arith.constant 3.125000e-02 : f32
    %97 = vector.broadcast %cst_25 : f32 to vector<16x1xf32>
    %98 = arith.mulf %96, %97 : vector<16x1xf32>
    %cst_26 = arith.constant 9.99999974E-6 : f32
    %99 = vector.broadcast %cst_26 : f32 to vector<16x1xf32>
    %100 = arith.addf %98, %99 : vector<16x1xf32>
    %101 = math.rsqrt %100 : vector<16x1xf32>
    %102 = vector.broadcast %101 : vector<16x1xf32> to vector<16x128xf32>
    %103 = arith.mulf %93, %102 : vector<16x128xf32>
    %104 = vector.broadcast %79 : vector<1x128xf32> to vector<16x128xf32>
    %105 = arith.mulf %103, %104 : vector<16x128xf32>
    %106 = vector.broadcast %80 : vector<1x128xf32> to vector<16x128xf32>
    %107 = arith.addf %105, %106 : vector<16x128xf32>
    %108 = arith.addf %78, %107 : vector<16x128xf32>
    %cst_27 = arith.constant 0.000000e+00 : f32
    %109 = vector.broadcast %cst_27 : f32 to vector<16x128xf32>
    %110 = arith.maximumf %108, %109 : vector<16x128xf32>
    %c0_28 = arith.constant 0 : index
    %c0_29 = arith.constant 0 : index
    %111 = vector.load %arg6[%c0_28, %c0_29] : memref<16x128xf32, #tpu.memory_space<vmem>>, vector<16x128xf32>
    tpu.vector_store %arg6[%c0_28, %c0_29], %110 {strides = array<i32>} : memref<16x128xf32, #tpu.memory_space<vmem>>, vector<16x128xf32>,
    return
  }
  func.func @transform_0(%arg0: i32) -> (i32, i32) {
    %c0_i32 = arith.constant 0 : i32
    %c0_i32_0 = arith.constant 0 : i32
    return %arg0, %c0_i32 : i32, i32
  }
  func.func @transform_1(%arg0: i32) -> (i32, i32) {
    %c0_i32 = arith.constant 0 : i32
    %c0_i32_0 = arith.constant 0 : i32
    %c0_i32_1 = arith.constant 0 : i32
    return %c0_i32, %c0_i32_0 : i32, i32
  }
  func.func @transform_2(%arg0: i32) -> (i32, i32) {
    %c0_i32 = arith.constant 0 : i32
    %c0_i32_0 = arith.constant 0 : i32
    %c0_i32_1 = arith.constant 0 : i32
    return %c0_i32, %c0_i32_0 : i32, i32
  }
  func.func @transform_3(%arg0: i32) -> (i32, i32) {
    %c0_i32 = arith.constant 0 : i32
    %c0_i32_0 = arith.constant 0 : i32
    %c0_i32_1 = arith.constant 0 : i32
    return %c0_i32, %c0_i32_0 : i32, i32
  }
  func.func @transform_4(%arg0: i32) -> (i32, i32) {
    %c0_i32 = arith.constant 0 : i32
    %c0_i32_0 = arith.constant 0 : i32
    %c0_i32_1 = arith.constant 0 : i32
    return %c0_i32, %c0_i32_0 : i32, i32
  }
  func.func @transform_5(%arg0: i32) -> (i32, i32) {
    %c0_i32 = arith.constant 0 : i32
    %c0_i32_0 = arith.constant 0 : i32
    return %arg0, %c0_i32 : i32, i32
  }
}

</mosaic_0001>

<llo_original>
// kernel: tpu_custom_call.1
$region0: #{tpu_custom_call.1}
  #allocation0 [shape = 'u32[]', space=smem, size = 0x4, offset = 0x4, fixed_abs, tag = 'smem constant byte address 0x4 - core index']
  #allocation1 [shape = 'u32[144,128]{1,0:T(1,128)}', space=vmem, size = 0x12000, scoped, tag = 'internal scratch']
  %s0 = inlined_call_operand.hbm [shape: bf16[16,128], index: 0, kind: input, shape index: {}]
  %s1 = inlined_call_operand.hbm [shape: bf16[128,256], index: 1, kind: input, shape index: {}]
  %s2 = inlined_call_operand.hbm [shape: bf16[128,128], index: 2, kind: input, shape index: {}]
  %s3 = inlined_call_operand.vmem [shape: f32[3,128], index: 3, kind: input, shape index: {}]
  %s4 = inlined_call_operand.hbm [shape: f32[6,128], index: 4, kind: input, shape index: {}]
  %s5 = inlined_call_operand.hbm [shape: f32[16,128], index: 5, kind: output, shape index: {}]
  %s6 = sld [smem:[#allocation0]]
  $region46: #{tpu_custom_call.1} parent=0
    _
  %s8 = ssub.s32 1, %s6
  %s9 = scalar_select 0, %s8, %s6
  $region1: #{tpu_custom_call.1} parent=0
    #allocation2 [shape = 'u8[4096]{0}', space=vmem, size = 0x1000, scoped, tag = 'input window, operand 0, single buffered']
    #allocation3 [shape = 's32[1]{0}', space=sflag, size = 0x4, scoped, tag = 'scoped memory for tpu_custom_call.1']
    #allocation4 [shape = 's32[1]{0}', space=sflag, size = 0x4, scoped, tag = 'scoped memory for tpu_custom_call.1']
    #allocation5 [shape = 'u8[65536]{0}', space=vmem, size = 0x10000, scoped, tag = 'input window, operand 1, single buffered']
    #allocation6 [shape = 's32[1]{0}', space=sflag, size = 0x4, scoped, tag = 'scoped memory for tpu_custom_call.1']
    #allocation7 [shape = 'u8[32768]{0}', space=vmem, size = 0x8000, scoped, tag = 'input window, operand 2, single buffered']
    #allocation8 [shape = 'u8[4096]{0}', space=vmem, size = 0x1000, scoped, tag = 'input window, operand 4, single buffered']
    #allocation9 [shape = 's32[1]{0}', space=sflag, size = 0x4, scoped, tag = 'scoped memory for tpu_custom_call.1']
    #allocation10 [shape = 'u8[8192]{0}', space=vmem, size = 0x2000, scoped, tag = 'output window, operand 0, single buffered']
    %10 = vsyncpa [#allocation3], 0
    %11 = vsyncpa [#allocation6], 0
    %12 = vsyncpa [#allocation9], 0
    %13 = vsyncpa [#allocation4], 0
    // Predicated region
    $region2: #{tpu_custom_call.1} parent=1 // pred_check
      _
    $region3: #{tpu_custom_call.1} parent=1 // pred_check_branch
      %15 = sbr.rel (0) target = $region5
    $region4: #{tpu_custom_call.1} parent=1 // pred_region
      %s17 = ssub.s32 128, 128
      %18 = vsyncadd [#allocation3], %s17
      %s19 = sshll.u32 [#allocation2], 4
      %s20 = int_to_ptr.vmem [resolvable:$true] %s19
      %25 = dma.hbm_to_vmem [thread:$0]  %s0, 128, %s20, [#allocation3], 64, 64, 4
    $region5: #{tpu_custom_call.1} parent=1 // pred_fallthru
      _
    // Predicated region
    $region6: #{tpu_custom_call.1} parent=1 // pred_check
      _
    $region7: #{tpu_custom_call.1} parent=1 // pred_check_branch
      %27 = sbr.rel (0) target = $region9
    $region8: #{tpu_custom_call.1} parent=1 // pred_region
      %s29 = ssub.s32 2048, 2048
      %30 = vsyncadd [#allocation6], %s29
      %s31 = sshll.u32 [#allocation5], 4
      %s32 = int_to_ptr.vmem [resolvable:$true] %s31
      %37 = dma.hbm_to_vmem [thread:$0]  %s1, 2048, %s32, [#allocation6], 128, 128, 8
    $region9: #{tpu_custom_call.1} parent=1 // pred_fallthru
      _
    // Predicated region
    $region10: #{tpu_custom_call.1} parent=1 // pred_check
      _
    $region11: #{tpu_custom_call.1} parent=1 // pred_check_branch
      %39 = sbr.rel (0) target = $region13
    $region12: #{tpu_custom_call.1} parent=1 // pred_region
      %s41 = ssub.s32 1024, 1024
      %42 = vsyncadd [#allocation6], %s41
      %s43 = sshll.u32 [#allocation7], 4
      %s44 = int_to_ptr.vmem [resolvable:$true] %s43
      %49 = dma.hbm_to_vmem [thread:$0]  %s2, 1024, %s44, [#allocation6], 64, 64, 4
    $region13: #{tpu_custom_call.1} parent=1 // pred_fallthru
      _
    // Predicated region
    $region14: #{tpu_custom_call.1} parent=1 // pred_check
      _
    $region15: #{tpu_custom_call.1} parent=1 // pred_check_branch
      %51 = sbr.rel (0) target = $region17
    $region16: #{tpu_custom_call.1} parent=1 // pred_region
      _
    $region17: #{tpu_custom_call.1} parent=1 // pred_fallthru
      _
    // Predicated region
    $region18: #{tpu_custom_call.1} parent=1 // pred_check
      _
    $region19: #{tpu_custom_call.1} parent=1 // pred_check_branch
      %53 = sbr.rel (0) target = $region21
    $region20: #{tpu_custom_call.1} parent=1 // pred_region
      %s55 = ssub.s32 128, 128
      %56 = vsyncadd [#allocation9], %s55
      %s58 = sshll.u32 [#allocation8], 4
      %s59 = int_to_ptr.vmem [resolvable:$true] %s58
      %61 = dma.hbm_to_vmem [thread:$0]  %s4, 128, %s59, [#allocation9]
    $region21: #{tpu_custom_call.1} parent=1 // pred_fallthru
      _
    // Predicated region
    $region22: #{tpu_custom_call.1} parent=1 // pred_check
      _
    $region23: #{tpu_custom_call.1} parent=1 // pred_check_branch
      %63 = sbr.rel (0) target = $region25
    $region24: #{tpu_custom_call.1} parent=1 // pred_region
      %64 = dma.done [#allocation3], 128
    $region25: #{tpu_custom_call.1} parent=1 // pred_fallthru
      _
    // Predicated region
    $region26: #{tpu_custom_call.1} parent=1 // pred_check
      _
    $region27: #{tpu_custom_call.1} parent=1 // pred_check_branch
      %66 = sbr.rel (0) target = $region29
    $region28: #{tpu_custom_call.1} parent=1 // pred_region
      %67 = dma.done [#allocation6], 2048
    $region29: #{tpu_custom_call.1} parent=1 // pred_fallthru
      _
    // Predicated region
    $region30: #{tpu_custom_call.1} parent=1 // pred_check
      _
    $region31: #{tpu_custom_call.1} parent=1 // pred_check_branch
      %69 = sbr.rel (0) target = $region33
    $region32: #{tpu_custom_call.1} parent=1 // pred_region
      %70 = dma.done [#allocation6], 1024
    $region33: #{tpu_custom_call.1} parent=1 // pred_fallthru
      _
    // Predicated region
    $region34: #{tpu_custom_call.1} parent=1 // pred_check
      _
    $region35: #{tpu_custom_call.1} parent=1 // pred_check_branch
      %72 = sbr.rel (0) target = $region37
    $region36: #{tpu_custom_call.1} parent=1 // pred_region
      %73 = dma.done [#allocation9], 128
    $region37: #{tpu_custom_call.1} parent=1 // pred_fallthru
      _
    %v75 = vld [vmem:[#allocation2] sm:$0xf]
    %v76 = vld [vmem:[#allocation2 + $0x4] sm:$0xf]
    %v77 = vld [vmem:[%s3] sm:$0x7]
    %v78 = vld [vmem:[#allocation8] sm:$0x3f]
    %v79 = vld [vmem:[#allocation5] sm:$0xff]
    %v80 = vld [vmem:[#allocation5 + $0x8] sm:$0xff]
    %v81 = vld [vmem:[#allocation5 + $0x10] sm:$0xff]
    %v82 = vld [vmem:[#allocation5 + $0x18] sm:$0xff]
    %v83 = vld [vmem:[#allocation5 + $0x20] sm:$0xff]
    %v84 = vld [vmem:[#allocation5 + $0x28] sm:$0xff]
    %v85 = vld [vmem:[#allocation5 + $0x30] sm:$0xff]
    %v86 = vld [vmem:[#allocation5 + $0x38] sm:$0xff]
    %v87 = vld [vmem:[#allocation5 + $0x40] sm:$0xff]
    %v88 = vld [vmem:[#allocation5 + $0x48] sm:$0xff]
    %v89 = vld [vmem:[#allocation5 + $0x50] sm:$0xff]
    %v90 = vld [vmem:[#allocation5 + $0x58] sm:$0xff]
    %v91 = vld [vmem:[#allocation5 + $0x60] sm:$0xff]
    %v92 = vld [vmem:[#allocation5 + $0x68] sm:$0xff]
    %v93 = vld [vmem:[#allocation5 + $0x70] sm:$0xff]
    %v94 = vld [vmem:[#allocation5 + $0x78] sm:$0xff]
    %v97 = vunpack.c.l.b16 %v75
    %v98 = vunpack.c.l.b16 %v76
    %v99 = vpack.c.b16 %v98, %v97
    %v117 = vunpack.c.l.b16 %v79
    %v118 = vunpack.c.h.b16 %v79
    %v119 = vunpack.c.l.b16 %v80
    %v120 = vunpack.c.h.b16 %v80
    %v121 = vunpack.c.l.b16 %v81
    %v122 = vunpack.c.h.b16 %v81
    %v123 = vunpack.c.l.b16 %v82
    %v124 = vunpack.c.h.b16 %v82
    %v125 = vunpack.c.l.b16 %v83
    %v126 = vunpack.c.h.b16 %v83
    %v127 = vunpack.c.l.b16 %v84
    %v128 = vunpack.c.h.b16 %v84
    %v129 = vunpack.c.l.b16 %v85
    %v130 = vunpack.c.h.b16 %v85
    %v131 = vunpack.c.l.b16 %v86
    %v132 = vunpack.c.h.b16 %v86
    %v133 = vunpack.c.l.b16 %v87
    %v134 = vunpack.c.h.b16 %v87
    %v135 = vunpack.c.l.b16 %v88
    %v136 = vunpack.c.h.b16 %v88
    %v137 = vunpack.c.l.b16 %v89
    %v138 = vunpack.c.h.b16 %v89
    %v139 = vunpack.c.l.b16 %v90
    %v140 = vunpack.c.h.b16 %v90
    %v141 = vunpack.c.l.b16 %v91
    %v142 = vunpack.c.h.b16 %v91
    %v143 = vunpack.c.l.b16 %v92
    %v144 = vunpack.c.h.b16 %v92
    %v145 = vunpack.c.l.b16 %v93
    %v146 = vunpack.c.h.b16 %v93
    %v147 = vunpack.c.l.b16 %v94
    %v148 = vunpack.c.h.b16 %v94
    %v149 = vpack.c.b16 %v119, %v117
    %v150 = vpack.c.b16 %v120, %v118
    %v151 = vpack.c.b16 %v123, %v121
    %v152 = vpack.c.b16 %v124, %v122
    %v153 = vpack.c.b16 %v127, %v125
    %v154 = vpack.c.b16 %v128, %v126
    %v155 = vpack.c.b16 %v131, %v129
    %v156 = vpack.c.b16 %v132, %v130
    %v157 = vpack.c.b16 %v135, %v133
    %v158 = vpack.c.b16 %v136, %v134
    %v159 = vpack.c.b16 %v139, %v137
    %v160 = vpack.c.b16 %v140, %v138
    %v161 = vpack.c.b16 %v143, %v141
    %v162 = vpack.c.b16 %v144, %v142
    %v163 = vpack.c.b16 %v147, %v145
    %v164 = vpack.c.b16 %v148, %v146
    %181 = vmatprep.subr.bf16.mxu0 %v164
    %182 = vmatpush1.bf16.msra.mxu0 %v163
    %183 = vmatprep.subr.bf16.mxu0 %v162
    %184 = vmatpush1.bf16.msra.mxu0 %v161
    %185 = vmatprep.subr.bf16.mxu0 %v160
    %186 = vmatpush1.bf16.msra.mxu0 %v159
    %187 = vmatprep.subr.bf16.mxu0 %v158
    %188 = vmatpush1.bf16.msra.mxu0 %v157
    %189 = vmatprep.subr.bf16.mxu0 %v156
    %190 = vmatpush1.bf16.msra.mxu0 %v155
    %191 = vmatprep.subr.bf16.mxu0 %v154
    %192 = vmatpush1.bf16.msra.mxu0 %v153
    %193 = vmatprep.subr.bf16.mxu0 %v152
    %194 = vmatpush1.bf16.msra.mxu0 %v151
    %195 = vmatprep.subr.bf16.mxu0 %v150
    %196 = vmatpush1.bf16.msra.mxu0 %v149
    %197 = vmatprep.subr.bf16.mxu0 0
    %198 = vmatpush2.bf16.msra.mxu0 0
    %199 = vmatprep.subr.bf16.mxu0 0
    %200 = vmatpush2.bf16.msra.mxu0 0
    %201 = vmatprep.subr.bf16.mxu0 0
    %202 = vmatpush2.bf16.msra.mxu0 0
    %203 = vmatprep.subr.bf16.mxu0 0
    %204 = vmatpush2.bf16.msra.mxu0 0
    %205 = vmatprep.subr.bf16.mxu0 0
    %206 = vmatpush2.bf16.msra.mxu0 0
    %207 = vmatprep.subr.bf16.mxu0 0
    %208 = vmatpush2.bf16.msra.mxu0 0
    %209 = vmatprep.subr.bf16.mxu0 0
    %210 = vmatpush2.bf16.msra.mxu0 0
    %211 = vmatprep.subr.bf16.mxu0 0
    %212 = vmatpush2.bf16.msra.mxu0 0
    %213 = vmatprep.mubr.bf16.mxu0 0
    %214 = vmatmul.mubr.bf16.gmra.mxu0 %v99
    %v215 = vpop.f32.mrf.mxu0
    %v216 = vadd.f32 0.0, %v215
    %v217 = vpop.f32.mrf.mxu0
    %v218 = vadd.f32 0.0, %v217
    %v219 = vpop.f32.mrf.mxu0
    %v220 = vadd.f32 0.0, %v219
    %v221 = vpop.f32.mrf.mxu0
    %v222 = vadd.f32 0.0, %v221
    %223 = vdwg.mxu0
    %v224 = vlaneseq
    %v225 = vshrl.u32 %v224, 7
    %v226 = vsub.s32 0, %v225
    %v227 = vrot.slane %v77, %v226
    %v228 = vadd.f32 %v216, %v227
    %v229 = vadd.f32 %v220, %v227
    %v230 = vlaneseq
    %v231 = vshrl.u32 %v230, 7
    %v232 = vsub.s32 0, %v231
    %v233 = vrot.slane %v78, %v232
    %v234 = vadd.f32 %v218, %v233
    %v235 = vadd.f32 %v222, %v233
    %236 = vadd.xlane.f32.xlu0 %v228
    %v237 = vpop.xlane.xlu0 %236
    %238 = vadd.xlane.f32.xlu0 %v229
    %v239 = vpop.xlane.xlu0 %238
    %v240 = vmul.f32 %v237, 0.015625
    %v241 = vmul.f32 %v239, 0.015625
    %v242 = vsub.f32 %v228, %v240
    %v243 = vsub.f32 %v229, %v241
    %v244 = vlaneseq
    %v245 = vand.u32 %v244, 127
    %vm246 = vcmp.lt.s32.totalorder %v245, 64
    %v247 = vsel %vm246, 1, 0
    %v248 = vcvt.s32.f32 %v247
    %v249 = vmul.f32 %v242, %v248
    %v250 = vmul.f32 %v243, %v248
    %v251 = vmul.f32 %v249, %v249
    %v252 = vmul.f32 %v250, %v250
    %253 = vadd.xlane.f32.xlu0 %v251
    %v254 = vpop.xlane.xlu0 %253
    %255 = vadd.xlane.f32.xlu0 %v252
    %v256 = vpop.xlane.xlu0 %255
    %v257 = vmul.f32 %v254, 0.015625
    %v258 = vmul.f32 %v256, 0.015625
    %v259 = vadd.f32 %v257, 1e-05
    %v260 = vadd.f32 %v258, 1e-05
    %v261 = vrsqrt.pop %v259
    %v262 = vrsqrt.pop %v260
    %v263 = vmul.f32 %v249, %v261
    %v264 = vmul.f32 %v250, %v262
    %v265 = vlaneseq
    %v266 = vshrl.u32 %v265, 7
    %v267 = vsub.s32 1, %v266
    %v268 = vrot.slane %v77, %v267
    %v269 = vmul.f32 %v263, %v268
    %v270 = vmul.f32 %v264, %v268
    %v271 = vlaneseq
    %v272 = vshrl.u32 %v271, 7
    %v273 = vsub.s32 2, %v272
    %v274 = vrot.slane %v77, %v273
    %v275 = vadd.f32 %v269, %v274
    %v276 = vadd.f32 %v270, %v274
    %v277 = vmax.f32 %v275, 0.0
    %v278 = vmax.f32 %v276, 0.0
    %v279 = vpack.c.bf16 %v278, %v277
    %v280 = vld [vmem:[#allocation7] sm:$0xf]
    %v281 = vld [vmem:[#allocation7 + $0x4] sm:$0xf]
    %v282 = vld [vmem:[#allocation7 + $0x8] sm:$0xf]
    %v283 = vld [vmem:[#allocation7 + $0xc] sm:$0xf]
    %v284 = vld [vmem:[#allocation7 + $0x10] sm:$0xf]
    %v285 = vld [vmem:[#allocation7 + $0x14] sm:$0xf]
    %v286 = vld [vmem:[#allocation7 + $0x18] sm:$0xf]
    %v287 = vld [vmem:[#allocation7 + $0x1c] sm:$0xf]
    %v288 = vld [vmem:[#allocation7 + $0x20] sm:$0xf]
    %v289 = vld [vmem:[#allocation7 + $0x24] sm:$0xf]
    %v290 = vld [vmem:[#allocation7 + $0x28] sm:$0xf]
    %v291 = vld [vmem:[#allocation7 + $0x2c] sm:$0xf]
    %v292 = vld [vmem:[#allocation7 + $0x30] sm:$0xf]
    %v293 = vld [vmem:[#allocation7 + $0x34] sm:$0xf]
    %v294 = vld [vmem:[#allocation7 + $0x38] sm:$0xf]
    %v295 = vld [vmem:[#allocation7 + $0x3c] sm:$0xf]
    %v296 = vlaneseq
    %v297 = vshrl.u32 %v296, 7
    %v298 = vsub.s32 3, %v297
    %v299 = vrot.slane %v78, %v298
    %v316 = vunpack.c.l.b16 %v280
    %v317 = vunpack.c.l.b16 %v281
    %v318 = vunpack.c.l.b16 %v282
    %v319 = vunpack.c.l.b16 %v283
    %v320 = vunpack.c.l.b16 %v284
    %v321 = vunpack.c.l.b16 %v285
    %v322 = vunpack.c.l.b16 %v286
    %v323 = vunpack.c.l.b16 %v287
    %v324 = vunpack.c.l.b16 %v288
    %v325 = vunpack.c.l.b16 %v289
    %v326 = vunpack.c.l.b16 %v290
    %v327 = vunpack.c.l.b16 %v291
    %v328 = vunpack.c.l.b16 %v292
    %v329 = vunpack.c.l.b16 %v293
    %v330 = vunpack.c.l.b16 %v294
    %v331 = vunpack.c.l.b16 %v295
    %v332 = vpack.c.b16 %v317, %v316
    %v333 = vpack.c.b16 %v319, %v318
    %v334 = vpack.c.b16 %v321, %v320
    %v335 = vpack.c.b16 %v323, %v322
    %v336 = vpack.c.b16 %v325, %v324
    %v337 = vpack.c.b16 %v327, %v326
    %v338 = vpack.c.b16 %v329, %v328
    %v339 = vpack.c.b16 %v331, %v330
    %348 = vmatprep.subr.bf16.mxu0 0
    %349 = vmatpush1.bf16.msra.mxu0 %v339
    %350 = vmatprep.subr.bf16.mxu0 0
    %351 = vmatpush1.bf16.msra.mxu0 %v338
    %352 = vmatprep.subr.bf16.mxu0 0
    %353 = vmatpush1.bf16.msra.mxu0 %v337
    %354 = vmatprep.subr.bf16.mxu0 0
    %355 = vmatpush1.bf16.msra.mxu0 %v336
    %356 = vmatprep.subr.bf16.mxu0 0
    %357 = vmatpush1.bf16.msra.mxu0 %v335
    %358 = vmatprep.subr.bf16.mxu0 0
    %359 = vmatpush1.bf16.msra.mxu0 %v334
    %360 = vmatprep.subr.bf16.mxu0 0
    %361 = vmatpush1.bf16.msra.mxu0 %v333
    %362 = vmatprep.subr.bf16.mxu0 0
    %363 = vmatpush1.bf16.msra.mxu0 %v332
    %364 = vmatprep.subr.bf16.mxu0 0
    %365 = vmatpush2.bf16.msra.mxu0 0
    %366 = vmatprep.subr.bf16.mxu0 0
    %367 = vmatpush2.bf16.msra.mxu0 0
    %368 = vmatprep.subr.bf16.mxu0 0
    %369 = vmatpush2.bf16.msra.mxu0 0
    %370 = vmatprep.subr.bf16.mxu0 0
    %371 = vmatpush2.bf16.msra.mxu0 0
    %372 = vmatprep.subr.bf16.mxu0 0
    %373 = vmatpush2.bf16.msra.mxu0 0
    %374 = vmatprep.subr.bf16.mxu0 0
    %375 = vmatpush2.bf16.msra.mxu0 0
    %376 = vmatprep.subr.bf16.mxu0 0
    %377 = vmatpush2.bf16.msra.mxu0 0
    %378 = vmatprep.subr.bf16.mxu0 0
    %379 = vmatpush2.bf16.msra.mxu0 0
    %380 = vmatprep.mubr.bf16.mxu0 0
    %381 = vmatmul.mubr.bf16.gmra.mxu0 %v279
    %v382 = vpop.f32.mrf.mxu0
    %v383 = vadd.f32 %v299, %v382
    %v384 = vpop.f32.mrf.mxu0
    %v385 = vpop.f32.mrf.mxu0
    %v386 = vadd.f32 %v299, %v385
    %v387 = vpop.f32.mrf.mxu0
    %388 = vdwg.mxu0
    %389 = vadd.xlane.f32.xlu0 %v383
    %v390 = vpop.xlane.xlu0 %389
    %391 = vadd.xlane.f32.xlu0 %v386
    %v392 = vpop.xlane.xlu0 %391
    %v393 = vmul.f32 %v390, 0.03125
    %v394 = vmul.f32 %v392, 0.03125
    %v395 = vsub.f32 %v383, %v393
    %v396 = vsub.f32 %v386, %v394
    %vm397 = vcmp.lt.s32.totalorder %v245, 32
    %v398 = vsel %vm397, 1, 0
    %v399 = vcvt.s32.f32 %v398
    %v400 = vmul.f32 %v395, %v399
    %v401 = vmul.f32 %v396, %v399
    %v402 = vmul.f32 %v400, %v400
    %v403 = vmul.f32 %v401, %v401
    %404 = vadd.xlane.f32.xlu0 %v402
    %v405 = vpop.xlane.xlu0 %404
    %406 = vadd.xlane.f32.xlu0 %v403
    %v407 = vpop.xlane.xlu0 %406
    %v408 = vmul.f32 %v405, 0.03125
    %v409 = vmul.f32 %v407, 0.03125
    %v410 = vadd.f32 %v408, 1e-05
    %v411 = vadd.f32 %v409, 1e-05
    %v412 = vrsqrt.pop %v410
    %v413 = vrsqrt.pop %v411
    %v414 = vmul.f32 %v400, %v412
    %v415 = vmul.f32 %v401, %v413
    %v416 = vlaneseq
    %v417 = vshrl.u32 %v416, 7
    %v418 = vsub.s32 4, %v417
    %v419 = vrot.slane %v78, %v418
    %v420 = vmul.f32 %v414, %v419
    %v421 = vmul.f32 %v415, %v419
    %v422 = vlaneseq
    %v423 = vshrl.u32 %v422, 7
    %v424 = vsub.s32 5, %v423
    %v425 = vrot.slane %v78, %v424
    %v426 = vadd.f32 %v420, %v425
    %v427 = vadd.f32 %v421, %v425
    %428 = vadd.xlane.f32.xlu0 %v234
    %v429 = vpop.xlane.xlu0 %428
    %430 = vadd.xlane.f32.xlu0 %v235
    %v431 = vpop.xlane.xlu0 %430
    %v432 = vmul.f32 %v429, 0.03125
    %v433 = vmul.f32 %v431, 0.03125
    %v434 = vsub.f32 %v234, %v432
    %v435 = vsub.f32 %v235, %v433
    %v436 = vmul.f32 %v434, %v399
    %v437 = vmul.f32 %v435, %v399
    %v438 = vmul.f32 %v436, %v436
    %v439 = vmul.f32 %v437, %v437
    %440 = vadd.xlane.f32.xlu0 %v438
    %v441 = vpop.xlane.xlu0 %440
    %442 = vadd.xlane.f32.xlu0 %v439
    %v443 = vpop.xlane.xlu0 %442
    %v444 = vmul.f32 %v441, 0.03125
    %v445 = vmul.f32 %v443, 0.03125
    %v446 = vadd.f32 %v444, 1e-05
    %v447 = vadd.f32 %v445, 1e-05
    %v448 = vrsqrt.pop %v446
    %v449 = vrsqrt.pop %v447
    %v450 = vmul.f32 %v436, %v448
    %v451 = vmul.f32 %v437, %v449
    %v452 = vlaneseq
    %v453 = vshrl.u32 %v452, 7
    %v454 = vsub.s32 1, %v453
    %v455 = vrot.slane %v78, %v454
    %v456 = vmul.f32 %v450, %v455
    %v457 = vmul.f32 %v451, %v455
    %v458 = vlaneseq
    %v459 = vshrl.u32 %v458, 7
    %v460 = vsub.s32 2, %v459
    %v461 = vrot.slane %v78, %v460
    %v462 = vadd.f32 %v456, %v461
    %v463 = vadd.f32 %v457, %v461
    %v464 = vadd.f32 %v426, %v462
    %v465 = vadd.f32 %v427, %v463
    %v466 = vmax.f32 %v464, 0.0
    %v467 = vmax.f32 %v465, 0.0
    %468 = vst [vmem:[#allocation10] sm:$0xff] %v466
    %469 = vst [vmem:[#allocation10 + $0x8] sm:$0xff] %v467
    // Predicated region
    $region38: #{tpu_custom_call.1} parent=1 // pred_check
      _
    $region39: #{tpu_custom_call.1} parent=1 // pred_check_branch
      %471 = sbr.rel (0) target = $region41
    $region40: #{tpu_custom_call.1} parent=1 // pred_region
      %s473 = ssub.s32 256, 256
      %474 = vsyncadd [#allocation4], %s473
      %s475 = sshll.u32 [#allocation10], 4
      %s476 = int_to_ptr.vmem [resolvable:$true] %s475
      %481 = dma.vmem_to_hbm [thread:$0]  %s476, 256, %s5, [#allocation4], 128, 128, 8
    $region41: #{tpu_custom_call.1} parent=1 // pred_fallthru
      _
    // Predicated region
    $region42: #{tpu_custom_call.1} parent=1 // pred_check
      _
    $region43: #{tpu_custom_call.1} parent=1 // pred_check_branch
      %483 = sbr.rel (0) target = $region45
    $region44: #{tpu_custom_call.1} parent=1 // pred_region
      %484 = dma.done [#allocation4], 256
    $region45: #{tpu_custom_call.1} parent=1 // pred_fallthru
      _
    %485 = vsyncpa [#allocation3], 1
    %486 = vsyncpa [#allocation6], 1
    %487 = vsyncpa [#allocation9], 1
    %488 = vsyncpa [#allocation4], 1

// kernel: tpu_custom_call.1
$region0: #{tpu_custom_call.1}
  #allocation0 [shape = 'u32[]', space=smem, size = 0x4, offset = 0x4, fixed_abs, tag = 'smem constant byte address 0x4 - core index']
  #allocation1 [shape = 'u32[144,128]{1,0:T(1,128)}', space=vmem, size = 0x12000, scoped, tag = 'internal scratch']
  %s0 = inlined_call_operand.hbm [shape: bf16[16,128], index: 0, kind: input, shape index: {}]
  %s1 = inlined_call_operand.hbm [shape: bf16[128,256], index: 1, kind: input, shape index: {}]
  %s2 = inlined_call_operand.hbm [shape: bf16[128,128], index: 2, kind: input, shape index: {}]
  %s3 = inlined_call_operand.vmem [shape: f32[3,128], index: 3, kind: input, shape index: {}]
  %s4 = inlined_call_operand.hbm [shape: f32[6,128], index: 4, kind: input, shape index: {}]
  %s5 = inlined_call_operand.hbm [shape: f32[16,128], index: 5, kind: output, shape index: {}]
  %s6 = sld [smem:[#allocation0]]
  $region46: #{tpu_custom_call.1} parent=0
    _
  %s8 = ssub.s32 1, %s6
  %s9 = scalar_select 0, %s8, %s6
  $region1: #{tpu_custom_call.1} parent=0
    #allocation2 [shape = 'u8[4096]{0}', space=vmem, size = 0x1000, scoped, tag = 'input window, operand 0, single buffered']
    #allocation3 [shape = 's32[1]{0}', space=sflag, size = 0x4, scoped, tag = 'scoped memory for tpu_custom_call.1']
    #allocation4 [shape = 's32[1]{0}', space=sflag, size = 0x4, scoped, tag = 'scoped memory for tpu_custom_call.1']
    #allocation5 [shape = 'u8[65536]{0}', space=vmem, size = 0x10000, scoped, tag = 'input window, operand 1, single buffered']
    #allocation6 [shape = 's32[1]{0}', space=sflag, size = 0x4, scoped, tag = 'scoped memory for tpu_custom_call.1']
    #allocation7 [shape = 'u8[32768]{0}', space=vmem, size = 0x8000, scoped, tag = 'input window, operand 2, single buffered']
    #allocation8 [shape = 'u8[4096]{0}', space=vmem, size = 0x1000, scoped, tag = 'input window, operand 4, single buffered']
    #allocation9 [shape = 's32[1]{0}', space=sflag, size = 0x4, scoped, tag = 'scoped memory for tpu_custom_call.1']
    #allocation10 [shape = 'u8[8192]{0}', space=vmem, size = 0x2000, scoped, tag = 'output window, operand 0, single buffered']
    %10 = vsyncpa [#allocation3], 0
    %11 = vsyncpa [#allocation6], 0
    %12 = vsyncpa [#allocation9], 0
    %13 = vsyncpa [#allocation4], 0
    // Predicated region
    $region2: #{tpu_custom_call.1} parent=1 // pred_check
      _
    $region3: #{tpu_custom_call.1} parent=1 // pred_check_branch
      %15 = sbr.rel (0) target = $region5
    $region4: #{tpu_custom_call.1} parent=1 // pred_region
      %s17 = ssub.s32 128, 128
      %18 = vsyncadd [#allocation3], %s17
      %s19 = sshll.u32 [#allocation2], 4
      %s20 = int_to_ptr.vmem [resolvable:$true] %s19
      %25 = dma.hbm_to_vmem [thread:$0]  %s0, 128, %s20, [#allocation3], 64, 64, 4
    $region5: #{tpu_custom_call.1} parent=1 // pred_fallthru
      _
    // Predicated region
    $region6: #{tpu_custom_call.1} parent=1 // pred_check
      _
    $region7: #{tpu_custom_call.1} parent=1 // pred_check_branch
      %27 = sbr.rel (0) target = $region9
    $region8: #{tpu_custom_call.1} parent=1 // pred_region
      %s29 = ssub.s32 2048, 2048
      %30 = vsyncadd [#allocation6], %s29
      %s31 = sshll.u32 [#allocation5], 4
      %s32 = int_to_ptr.vmem [resolvable:$true] %s31
      %37 = dma.hbm_to_vmem [thread:$0]  %s1, 2048, %s32, [#allocation6], 128, 128, 8
    $region9: #{tpu_custom_call.1} parent=1 // pred_fallthru
      _
    // Predicated region
    $region10: #{tpu_custom_call.1} parent=1 // pred_check
      _
    $region11: #{tpu_custom_call.1} parent=1 // pred_check_branch
      %39 = sbr.rel (0) target = $region13
    $region12: #{tpu_custom_call.1} parent=1 // pred_region
      %s41 = ssub.s32 1024, 1024
      %42 = vsyncadd [#allocation6], %s41
      %s43 = sshll.u32 [#allocation7], 4
      %s44 = int_to_ptr.vmem [resolvable:$true] %s43
      %49 = dma.hbm_to_vmem [thread:$0]  %s2, 1024, %s44, [#allocation6], 64, 64, 4
    $region13: #{tpu_custom_call.1} parent=1 // pred_fallthru
      _
    // Predicated region
    $region14: #{tpu_custom_call.1} parent=1 // pred_check
      _
    $region15: #{tpu_custom_call.1} parent=1 // pred_check_branch
      %51 = sbr.rel (0) target = $region17
    $region16: #{tpu_custom_call.1} parent=1 // pred_region
      _
    $region17: #{tpu_custom_call.1} parent=1 // pred_fallthru
      _
    // Predicated region
    $region18: #{tpu_custom_call.1} parent=1 // pred_check
      _
    $region19: #{tpu_custom_call.1} parent=1 // pred_check_branch
      %53 = sbr.rel (0) target = $region21
    $region20: #{tpu_custom_call.1} parent=1 // pred_region
      %s55 = ssub.s32 128, 128
      %56 = vsyncadd [#allocation9], %s55
      %s58 = sshll.u32 [#allocation8], 4
      %s59 = int_to_ptr.vmem [resolvable:$true] %s58
      %61 = dma.hbm_to_vmem [thread:$0]  %s4, 128, %s59, [#allocation9]
    $region21: #{tpu_custom_call.1} parent=1 // pred_fallthru
      _
    // Predicated region
    $region22: #{tpu_custom_call.1} parent=1 // pred_check
      _
    $region23: #{tpu_custom_call.1} parent=1 // pred_check_branch
      %63 = sbr.rel (0) target = $region25
    $region24: #{tpu_custom_call.1} parent=1 // pred_region
      %64 = dma.done [#allocation3], 128
    $region25: #{tpu_custom_call.1} parent=1 // pred_fallthru
      _
    // Predicated region
    $region26: #{tpu_custom_call.1} parent=1 // pred_check
      _
    $region27: #{tpu_custom_call.1} parent=1 // pred_check_branch
      %66 = sbr.rel (0) target = $region29
    $region28: #{tpu_custom_call.1} parent=1 // pred_region
      %67 = dma.done [#allocation6], 2048
    $region29: #{tpu_custom_call.1} parent=1 // pred_fallthru
      _
    // Predicated region
    $region30: #{tpu_custom_call.1} parent=1 // pred_check
      _
    $region31: #{tpu_custom_call.1} parent=1 // pred_check_branch
      %69 = sbr.rel (0) target = $region33
    $region32: #{tpu_custom_call.1} parent=1 // pred_region
      %70 = dma.done [#allocation6], 1024
    $region33: #{tpu_custom_call.1} parent=1 // pred_fallthru
      _
    // Predicated region
    $region34: #{tpu_custom_call.1} parent=1 // pred_check
      _
    $region35: #{tpu_custom_call.1} parent=1 // pred_check_branch
      %72 = sbr.rel (0) target = $region37
    $region36: #{tpu_custom_call.1} parent=1 // pred_region
      %73 = dma.done [#allocation9], 128
    $region37: #{tpu_custom_call.1} parent=1 // pred_fallthru
      _
    %v75 = vld [vmem:[#allocation2] sm:$0xf]
    %v76 = vld [vmem:[#allocation2 + $0x4] sm:$0xf]
    %v77 = vld [vmem:[%s3] sm:$0x7]
    %v78 = vld [vmem:[#allocation8] sm:$0x3f]
    %v79 = vld [vmem:[#allocation5] sm:$0xff]
    %v80 = vld [vmem:[#allocation5 + $0x8] sm:$0xff]
    %v81 = vld [vmem:[#allocation5 + $0x10] sm:$0xff]
    %v82 = vld [vmem:[#allocation5 + $0x18] sm:$0xff]
    %v83 = vld [vmem:[#allocation5 + $0x20] sm:$0xff]
    %v84 = vld [vmem:[#allocation5 + $0x28] sm:$0xff]
    %v85 = vld [vmem:[#allocation5 + $0x30] sm:$0xff]
    %v86 = vld [vmem:[#allocation5 + $0x38] sm:$0xff]
    %v87 = vld [vmem:[#allocation5 + $0x40] sm:$0xff]
    %v88 = vld [vmem:[#allocation5 + $0x48] sm:$0xff]
    %v89 = vld [vmem:[#allocation5 + $0x50] sm:$0xff]
    %v90 = vld [vmem:[#allocation5 + $0x58] sm:$0xff]
    %v91 = vld [vmem:[#allocation5 + $0x60] sm:$0xff]
    %v92 = vld [vmem:[#allocation5 + $0x68] sm:$0xff]
    %v93 = vld [vmem:[#allocation5 + $0x70] sm:$0xff]
    %v94 = vld [vmem:[#allocation5 + $0x78] sm:$0xff]
    %v97 = vunpack.c.l.b16 %v75
    %v98 = vunpack.c.l.b16 %v76
    %v99 = vpack.c.b16 %v98, %v97
    %v117 = vunpack.c.l.b16 %v79
    %v118 = vunpack.c.h.b16 %v79
    %v119 = vunpack.c.l.b16 %v80
    %v120 = vunpack.c.h.b16 %v80
    %v121 = vunpack.c.l.b16 %v81
    %v122 = vunpack.c.h.b16 %v81
    %v123 = vunpack.c.l.b16 %v82
    %v124 = vunpack.c.h.b16 %v82
    %v125 = vunpack.c.l.b16 %v83
    %v126 = vunpack.c.h.b16 %v83
    %v127 = vunpack.c.l.b16 %v84
    %v128 = vunpack.c.h.b16 %v84
    %v129 = vunpack.c.l.b16 %v85
    %v130 = vunpack.c.h.b16 %v85
    %v131 = vunpack.c.l.b16 %v86
    %v132 = vunpack.c.h.b16 %v86
    %v133 = vunpack.c.l.b16 %v87
    %v134 = vunpack.c.h.b16 %v87
    %v135 = vunpack.c.l.b16 %v88
    %v136 = vunpack.c.h.b16 %v88
    %v137 = vunpack.c.l.b16 %v89
    %v138 = vunpack.c.h.b16 %v89
    %v139 = vunpack.c.l.b16 %v90
    %v140 = vunpack.c.h.b16 %v90
    %v141 = vunpack.c.l.b16 %v91
    %v142 = vunpack.c.h.b16 %v91
    %v143 = vunpack.c.l.b16 %v92
    %v144 = vunpack.c.h.b16 %v92
    %v145 = vunpack.c.l.b16 %v93
    %v146 = vunpack.c.h.b16 %v93
    %v147 = vunpack.c.l.b16 %v94
    %v148 = vunpack.c.h.b16 %v94
    %v149 = vpack.c.b16 %v119, %v117
    %v150 = vpack.c.b16 %v120, %v118
    %v151 = vpack.c.b16 %v123, %v121
    %v152 = vpack.c.b16 %v124, %v122
    %v153 = vpack.c.b16 %v127, %v125
    %v154 = vpack.c.b16 %v128, %v126
    %v155 = vpack.c.b16 %v131, %v129
    %v156 = vpack.c.b16 %v132, %v130
    %v157 = vpack.c.b16 %v135, %v133
    %v158 = vpack.c.b16 %v136, %v134
    %v159 = vpack.c.b16 %v139, %v137
    %v160 = vpack.c.b16 %v140, %v138
    %v161 = vpack.c.b16 %v143, %v141
    %v162 = vpack.c.b16 %v144, %v142
    %v163 = vpack.c.b16 %v147, %v145
    %v164 = vpack.c.b16 %v148, %v146
    %181 = vmatprep.subr.bf16.mxu0 %v164
    %182 = vmatpush1.bf16.msra.mxu0 %v163
    %183 = vmatprep.subr.bf16.mxu0 %v162
    %184 = vmatpush1.bf16.msra.mxu0 %v161
    %185 = vmatprep.subr.bf16.mxu0 %v160
    %186 = vmatpush1.bf16.msra.mxu0 %v159
    %187 = vmatprep.subr.bf16.mxu0 %v158
    %188 = vmatpush1.bf16.msra.mxu0 %v157
    %189 = vmatprep.subr.bf16.mxu0 %v156
    %190 = vmatpush1.bf16.msra.mxu0 %v155
    %191 = vmatprep.subr.bf16.mxu0 %v154
    %192 = vmatpush1.bf16.msra.mxu0 %v153
    %193 = vmatprep.subr.bf16.mxu0 %v152
    %194 = vmatpush1.bf16.msra.mxu0 %v151
    %195 = vmatprep.subr.bf16.mxu0 %v150
    %196 = vmatpush1.bf16.msra.mxu0 %v149
    %197 = vmatprep.subr.bf16.mxu0 0
    %198 = vmatpush2.bf16.msra.mxu0 0
    %199 = vmatprep.subr.bf16.mxu0 0
    %200 = vmatpush2.bf16.msra.mxu0 0
    %201 = vmatprep.subr.bf16.mxu0 0
    %202 = vmatpush2.bf16.msra.mxu0 0
    %203 = vmatprep.subr.bf16.mxu0 0
    %204 = vmatpush2.bf16.msra.mxu0 0
    %205 = vmatprep.subr.bf16.mxu0 0
    %206 = vmatpush2.bf16.msra.mxu0 0
    %207 = vmatprep.subr.bf16.mxu0 0
    %208 = vmatpush2.bf16.msra.mxu0 0
    %209 = vmatprep.subr.bf16.mxu0 0
    %210 = vmatpush2.bf16.msra.mxu0 0
    %211 = vmatprep.subr.bf16.mxu0 0
    %212 = vmatpush2.bf16.msra.mxu0 0
    %213 = vmatprep.mubr.bf16.mxu0 0
    %214 = vmatmul.mubr.bf16.gmra.mxu0 %v99
    %v215 = vpop.f32.mrf.mxu0
    %v216 = vadd.f32 0.0, %v215
    %v217 = vpop.f32.mrf.mxu0
    %v218 = vadd.f32 0.0, %v217
    %v219 = vpop.f32.mrf.mxu0
    %v220 = vadd.f32 0.0, %v219
    %v221 = vpop.f32.mrf.mxu0
    %v222 = vadd.f32 0.0, %v221
    %223 = vdwg.mxu0
    %v224 = vlaneseq
    %v225 = vshrl.u32 %v224, 7
    %v226 = vsub.s32 0, %v225
    %v227 = vrot.slane %v77, %v226
    %v228 = vadd.f32 %v216, %v227
    %v229 = vadd.f32 %v220, %v227
    %v230 = vlaneseq
    %v231 = vshrl.u32 %v230, 7
    %v232 = vsub.s32 0, %v231
    %v233 = vrot.slane %v78, %v232
    %v234 = vadd.f32 %v218, %v233
    %v235 = vadd.f32 %v222, %v233
    %236 = vadd.xlane.f32.xlu0 %v228
    %v237 = vpop.xlane.xlu0 %236
    %238 = vadd.xlane.f32.xlu0 %v229
    %v239 = vpop.xlane.xlu0 %238
    %v240 = vmul.f32 %v237, 0.015625
    %v241 = vmul.f32 %v239, 0.015625
    %v242 = vsub.f32 %v228, %v240
    %v243 = vsub.f32 %v229, %v241
    %v244 = vlaneseq
    %v245 = vand.u32 %v244, 127
    %vm246 = vcmp.lt.s32.totalorder %v245, 64
    %v247 = vsel %vm246, 1, 0
    %v248 = vcvt.s32.f32 %v247
    %v249 = vmul.f32 %v242, %v248
    %v250 = vmul.f32 %v243, %v248
    %v251 = vmul.f32 %v249, %v249
    %v252 = vmul.f32 %v250, %v250
    %253 = vadd.xlane.f32.xlu0 %v251
    %v254 = vpop.xlane.xlu0 %253
    %255 = vadd.xlane.f32.xlu0 %v252
    %v256 = vpop.xlane.xlu0 %255
    %v257 = vmul.f32 %v254, 0.015625
    %v258 = vmul.f32 %v256, 0.015625
    %v259 = vadd.f32 %v257, 1e-05
    %v260 = vadd.f32 %v258, 1e-05
    %v261 = vrsqrt.pop %v259
    %v262 = vrsqrt.pop %v260
    %v263 = vmul.f32 %v249, %v261
    %v264 = vmul.f32 %v250, %v262
    %v265 = vlaneseq
    %v266 = vshrl.u32 %v265, 7
    %v267 = vsub.s32 1, %v266
    %v268 = vrot.slane %v77, %v267
    %v269 = vmul.f32 %v263, %v268
    %v270 = vmul.f32 %v264, %v268
    %v271 = vlaneseq
    %v272 = vshrl.u32 %v271, 7
    %v273 = vsub.s32 2, %v272
    %v274 = vrot.slane %v77, %v273
    %v275 = vadd.f32 %v269, %v274
    %v276 = vadd.f32 %v270, %v274
    %v277 = vmax.f32 %v275, 0.0
    %v278 = vmax.f32 %v276, 0.0
    %v279 = vpack.c.bf16 %v278, %v277
    %v280 = vld [vmem:[#allocation7] sm:$0xf]
    %v281 = vld [vmem:[#allocation7 + $0x4] sm:$0xf]
    %v282 = vld [vmem:[#allocation7 + $0x8] sm:$0xf]
    %v283 = vld [vmem:[#allocation7 + $0xc] sm:$0xf]
    %v284 = vld [vmem:[#allocation7 + $0x10] sm:$0xf]
    %v285 = vld [vmem:[#allocation7 + $0x14] sm:$0xf]
    %v286 = vld [vmem:[#allocation7 + $0x18] sm:$0xf]
    %v287 = vld [vmem:[#allocation7 + $0x1c] sm:$0xf]
    %v288 = vld [vmem:[#allocation7 + $0x20] sm:$0xf]
    %v289 = vld [vmem:[#allocation7 + $0x24] sm:$0xf]
    %v290 = vld [vmem:[#allocation7 + $0x28] sm:$0xf]
    %v291 = vld [vmem:[#allocation7 + $0x2c] sm:$0xf]
    %v292 = vld [vmem:[#allocation7 + $0x30] sm:$0xf]
    %v293 = vld [vmem:[#allocation7 + $0x34] sm:$0xf]
    %v294 = vld [vmem:[#allocation7 + $0x38] sm:$0xf]
    %v295 = vld [vmem:[#allocation7 + $0x3c] sm:$0xf]
    %v296 = vlaneseq
    %v297 = vshrl.u32 %v296, 7
    %v298 = vsub.s32 3, %v297
    %v299 = vrot.slane %v78, %v298
    %v316 = vunpack.c.l.b16 %v280
    %v317 = vunpack.c.l.b16 %v281
    %v318 = vunpack.c.l.b16 %v282
    %v319 = vunpack.c.l.b16 %v283
    %v320 = vunpack.c.l.b16 %v284
    %v321 = vunpack.c.l.b16 %v285
    %v322 = vunpack.c.l.b16 %v286
    %v323 = vunpack.c.l.b16 %v287
    %v324 = vunpack.c.l.b16 %v288
    %v325 = vunpack.c.l.b16 %v289
    %v326 = vunpack.c.l.b16 %v290
    %v327 = vunpack.c.l.b16 %v291
    %v328 = vunpack.c.l.b16 %v292
    %v329 = vunpack.c.l.b16 %v293
    %v330 = vunpack.c.l.b16 %v294
    %v331 = vunpack.c.l.b16 %v295
    %v332 = vpack.c.b16 %v317, %v316
    %v333 = vpack.c.b16 %v319, %v318
    %v334 = vpack.c.b16 %v321, %v320
    %v335 = vpack.c.b16 %v323, %v322
    %v336 = vpack.c.b16 %v325, %v324
    %v337 = vpack.c.b16 %v327, %v326
    %v338 = vpack.c.b16 %v329, %v328
    %v339 = vpack.c.b16 %v331, %v330
    %348 = vmatprep.subr.bf16.mxu0 0
    %349 = vmatpush1.bf16.msra.mxu0 %v339
    %350 = vmatprep.subr.bf16.mxu0 0
    %351 = vmatpush1.bf16.msra.mxu0 %v338
    %352 = vmatprep.subr.bf16.mxu0 0
    %353 = vmatpush1.bf16.msra.mxu0 %v337
    %354 = vmatprep.subr.bf16.mxu0 0
    %355 = vmatpush1.bf16.msra.mxu0 %v336
    %356 = vmatprep.subr.bf16.mxu0 0
    %357 = vmatpush1.bf16.msra.mxu0 %v335
    %358 = vmatprep.subr.bf16.mxu0 0
    %359 = vmatpush1.bf16.msra.mxu0 %v334
    %360 = vmatprep.subr.bf16.mxu0 0
    %361 = vmatpush1.bf16.msra.mxu0 %v333
    %362 = vmatprep.subr.bf16.mxu0 0
    %363 = vmatpush1.bf16.msra.mxu0 %v332
    %364 = vmatprep.subr.bf16.mxu0 0
    %365 = vmatpush2.bf16.msra.mxu0 0
    %366 = vmatprep.subr.bf16.mxu0 0
    %367 = vmatpush2.bf16.msra.mxu0 0
    %368 = vmatprep.subr.bf16.mxu0 0
    %369 = vmatpush2.bf16.msra.mxu0 0
    %370 = vmatprep.subr.bf16.mxu0 0
    %371 = vmatpush2.bf16.msra.mxu0 0
    %372 = vmatprep.subr.bf16.mxu0 0
    %373 = vmatpush2.bf16.msra.mxu0 0
    %374 = vmatprep.subr.bf16.mxu0 0
    %375 = vmatpush2.bf16.msra.mxu0 0
    %376 = vmatprep.subr.bf16.mxu0 0
    %377 = vmatpush2.bf16.msra.mxu0 0
    %378 = vmatprep.subr.bf16.mxu0 0
    %379 = vmatpush2.bf16.msra.mxu0 0
    %380 = vmatprep.mubr.bf16.mxu0 0
    %381 = vmatmul.mubr.bf16.gmra.mxu0 %v279
    %v382 = vpop.f32.mrf.mxu0
    %v383 = vadd.f32 %v299, %v382
    %v384 = vpop.f32.mrf.mxu0
    %v385 = vpop.f32.mrf.mxu0
    %v386 = vadd.f32 %v299, %v385
    %v387 = vpop.f32.mrf.mxu0
    %388 = vdwg.mxu0
    %389 = vadd.xlane.f32.xlu0 %v383
    %v390 = vpop.xlane.xlu0 %389
    %391 = vadd.xlane.f32.xlu0 %v386
    %v392 = vpop.xlane.xlu0 %391
    %v393 = vmul.f32 %v390, 0.03125
    %v394 = vmul.f32 %v392, 0.03125
    %v395 = vsub.f32 %v383, %v393
    %v396 = vsub.f32 %v386, %v394
    %vm397 = vcmp.lt.s32.totalorder %v245, 32
    %v398 = vsel %vm397, 1, 0
    %v399 = vcvt.s32.f32 %v398
    %v400 = vmul.f32 %v395, %v399
    %v401 = vmul.f32 %v396, %v399
    %v402 = vmul.f32 %v400, %v400
    %v403 = vmul.f32 %v401, %v401
    %404 = vadd.xlane.f32.xlu0 %v402
    %v405 = vpop.xlane.xlu0 %404
    %406 = vadd.xlane.f32.xlu0 %v403
    %v407 = vpop.xlane.xlu0 %406
    %v408 = vmul.f32 %v405, 0.03125
    %v409 = vmul.f32 %v407, 0.03125
    %v410 = vadd.f32 %v408, 1e-05
    %v411 = vadd.f32 %v409, 1e-05
    %v412 = vrsqrt.pop %v410
    %v413 = vrsqrt.pop %v411
    %v414 = vmul.f32 %v400, %v412
    %v415 = vmul.f32 %v401, %v413
    %v416 = vlaneseq
    %v417 = vshrl.u32 %v416, 7
    %v418 = vsub.s32 4, %v417
    %v419 = vrot.slane %v78, %v418
    %v420 = vmul.f32 %v414, %v419
    %v421 = vmul.f32 %v415, %v419
    %v422 = vlaneseq
    %v423 = vshrl.u32 %v422, 7
    %v424 = vsub.s32 5, %v423
    %v425 = vrot.slane %v78, %v424
    %v426 = vadd.f32 %v420, %v425
    %v427 = vadd.f32 %v421, %v425
    %428 = vadd.xlane.f32.xlu0 %v234
    %v429 = vpop.xlane.xlu0 %428
    %430 = vadd.xlane.f32.xlu0 %v235
    %v431 = vpop.xlane.xlu0 %430
    %v432 = vmul.f32 %v429, 0.03125
    %v433 = vmul.f32 %v431, 0.03125
    %v434 = vsub.f32 %v234, %v432
    %v435 = vsub.f32 %v235, %v433
    %v436 = vmul.f32 %v434, %v399
    %v437 = vmul.f32 %v435, %v399
    %v438 = vmul.f32 %v436, %v436
    %v439 = vmul.f32 %v437, %v437
    %440 = vadd.xlane.f32.xlu0 %v438
    %v441 = vpop.xlane.xlu0 %440
    %442 = vadd.xlane.f32.xlu0 %v439
    %v443 = vpop.xlane.xlu0 %442
    %v444 = vmul.f32 %v441, 0.03125
    %v445 = vmul.f32 %v443, 0.03125
    %v446 = vadd.f32 %v444, 1e-05
    %v447 = vadd.f32 %v445, 1e-05
    %v448 = vrsqrt.pop %v446
    %v449 = vrsqrt.pop %v447
    %v450 = vmul.f32 %v436, %v448
    %v451 = vmul.f32 %v437, %v449
    %v452 = vlaneseq
    %v453 = vshrl.u32 %v452, 7
    %v454 = vsub.s32 1, %v453
    %v455 = vrot.slane %v78, %v454
    %v456 = vmul.f32 %v450, %v455
    %v457 = vmul.f32 %v451, %v455
    %v458 = vlaneseq
    %v459 = vshrl.u32 %v458, 7
    %v460 = vsub.s32 2, %v459
    %v461 = vrot.slane %v78, %v460
    %v462 = vadd.f32 %v456, %v461
    %v463 = vadd.f32 %v457, %v461
    %v464 = vadd.f32 %v426, %v462
    %v465 = vadd.f32 %v427, %v463
    %v466 = vmax.f32 %v464, 0.0
    %v467 = vmax.f32 %v465, 0.0
    %468 = vst [vmem:[#allocation10] sm:$0xff] %v466
    %469 = vst [vmem:[#allocation10 + $0x8] sm:$0xff] %v467
    // Predicated region
    $region38: #{tpu_custom_call.1} parent=1 // pred_check
      _
    $region39: #{tpu_custom_call.1} parent=1 // pred_check_branch
      %471 = sbr.rel (0) target = $region41
    $region40: #{tpu_custom_call.1} parent=1 // pred_region
      %s473 = ssub.s32 256, 256
      %474 = vsyncadd [#allocation4], %s473
      %s475 = sshll.u32 [#allocation10], 4
      %s476 = int_to_ptr.vmem [resolvable:$true] %s475
      %481 = dma.vmem_to_hbm [thread:$0]  %s476, 256, %s5, [#allocation4], 128, 128, 8
    $region41: #{tpu_custom_call.1} parent=1 // pred_fallthru
      _
    // Predicated region
    $region42: #{tpu_custom_call.1} parent=1 // pred_check
      _
    $region43: #{tpu_custom_call.1} parent=1 // pred_check_branch
      %483 = sbr.rel (0) target = $region45
    $region44: #{tpu_custom_call.1} parent=1 // pred_region
      %484 = dma.done [#allocation4], 256
    $region45: #{tpu_custom_call.1} parent=1 // pred_fallthru
      _
    %485 = vsyncpa [#allocation3], 1
    %486 = vsyncpa [#allocation6], 1
    %487 = vsyncpa [#allocation9], 1
    %488 = vsyncpa [#allocation4], 1

</llo_original>
